<compile_context>
chip_gen: v7x
topology: tpu7x:2x2x1
jax: 0.10.0
libtpu: 0.0.40
codegen_flags: <defaults>
</compile_context>

<pallas_src>
import functools

import jax
import jax.numpy as jnp
import numpy as np
from jax.experimental import pallas as pl
from jax.experimental.pallas import tpu as pltpu


# ----------------------------------------------------------------------------- helpers


def _round_up(x: int, m: int) -> int:
    return ((x + m - 1) // m) * m


def _hz_to_mel(f):
    return 2595.0 * np.log10(1.0 + np.asarray(f, np.float64) / 700.0)


def _mel_to_hz(m):
    return 700.0 * (10.0 ** (np.asarray(m, np.float64) / 2595.0) - 1.0)


def _mel_filterbank(n_freqs: int, n_mels: int, sample_rate: int,
                    f_min: float = 0.0, f_max=None) -> np.ndarray:
    """torchaudio.functional.melscale_fbanks (mel_scale='htk', norm=None) -> (n_freqs, n_mels)."""
    if f_max is None:
        f_max = float(sample_rate // 2)
    all_freqs = np.linspace(0.0, sample_rate // 2, n_freqs)
    m_pts = np.linspace(_hz_to_mel(f_min), _hz_to_mel(f_max), n_mels + 2)
    f_pts = _mel_to_hz(m_pts)
    f_diff = f_pts[1:] - f_pts[:-1]                       # (n_mels + 1,)
    slopes = f_pts[None, :] - all_freqs[:, None]          # (n_freqs, n_mels + 2)
    down = -slopes[:, :-2] / f_diff[:-1]
    up = slopes[:, 2:] / f_diff[1:]
    fb = np.maximum(0.0, np.minimum(down, up))
    return fb.astype(np.float32)


def _padded_hann(n_fft: int, win_length: int) -> np.ndarray:
    """torch.hann_window(win_length, periodic=True), center-padded to n_fft (torch.stft)."""
    n = np.arange(win_length, dtype=np.float64)
    hann = 0.5 - 0.5 * np.cos(2.0 * np.pi * n / win_length)
    window = np.zeros(n_fft, dtype=np.float64)
    left = (n_fft - win_length) // 2
    window[left:left + win_length] = hann
    return window


def _windowed_dft_basis(n_fft: int, n_freq_pad: int, window: np.ndarray) -> np.ndarray:
    """Fused one-sided DFT basis [cos | -sin] with the Hann window folded in.

    Shape (n_fft, 2 * n_freq_pad); each half zero-padded in freq to n_freq_pad lanes.
    """
    n = np.arange(n_fft, dtype=np.float64)[:, None]
    k = np.arange(n_fft // 2 + 1, dtype=np.float64)[None, :]
    ang = 2.0 * np.pi * n * k / n_fft
    pad = n_freq_pad - (n_fft // 2 + 1)
    b_re = np.pad(window[:, None] * np.cos(ang), ((0, 0), (0, pad)))
    b_im = np.pad(-(window[:, None] * np.sin(ang)), ((0, 0), (0, pad)))
    return np.concatenate([b_re, b_im], axis=1).astype(np.float32)


# ----------------------------------------------------------------------------- kernel


def _mel_transform_kernel(ws_ref, b_ref, fb_ref, sb_ref, o_ref, *,
                          hop, frames_per_fft, n_freq_p, log_eps, clip,
                          fr_min, fr_max):
    """One (batch*channel item, frame tile) grid step.

    ws_ref: (frames_per_fft, ft, hop)  hop-row-shifted waveform chunks: chunk r,
                                       row f = samples [(f0+f+r)*hop, (f0+f+r+1)*hop)
    b_ref : (n_fft, 2*n_freq_p)        Hann-folded fused [cos | -sin] DFT basis (resident)
    fb_ref: (n_freq_p, n_mels_p)       mel filterbank, zero-padded rows/cols (resident)
    sb_ref: (8, n_mels_p)              row 0 = fused affine scale, row 1 = fused bias
    o_ref : (ft, n_mels_p)             frame-major, lane-dense output tile
    """
    scale = sb_ref[0:1, :]
    bias = sb_ref[1:2, :]

    # Decomposed, frame-less STFT: acc[f, :] = sum_r chunk_r[f, :] @ B[r*hop:(r+1)*hop, :]
    acc = jnp.dot(ws_ref[0].astype(b_ref.dtype), b_ref[0:hop, :],
                  preferred_element_type=jnp.float32)
    for r in range(1, frames_per_fft):
        acc = acc + jnp.dot(ws_ref[r].astype(b_ref.dtype),
                            b_ref[r * hop:(r + 1) * hop, :],
                            preferred_element_type=jnp.float32)

    re = acc[:, :n_freq_p]                                # static 128-aligned lane slices
    im = acc[:, n_freq_p:]
    mag = jnp.sqrt(re * re + im * im)                     # Spectrogram(power=1.0)
    mel = jnp.dot(mag.astype(fb_ref.dtype), fb_ref[...],
                  preferred_element_type=jnp.float32)     # MelScale

    z = jnp.log(mel + log_eps) * scale + bias             # log + fused scalers
    if clip:
        z = jnp.clip(z, fr_min, fr_max)
    o_ref[...] = z.astype(o_ref.dtype)


# ----------------------------------------------------------------------------- wrapper


class PallasTransforms:
    """Pallas TPU port of msanii `Transforms` (forward / inverse=False path)."""

    def __init__(self, sample_rate=44100, n_fft=2048, win_length=None, hop_length=None,
                 n_mels=128, feature_range=(-1.0, 1.0), eps=1e-5, clip=True,
                 running_mean=0.0, running_var=1.0, running_min=-1.0, running_max=1.0,
                 log_eps=1e-5, frame_tile=256, basis_dtype=jnp.bfloat16,
                 out_dtype=jnp.float32):
        self.sample_rate = sample_rate
        self.n_fft = n_fft
        self.win_length = win_length or n_fft
        self.hop_length = hop_length or self.win_length // 2
        self.n_mels = n_mels
        self.feature_range = feature_range
        self.clip = bool(clip)
        self.log_eps = float(log_eps)
        self.frame_tile = int(frame_tile)   # use 128 on v5e, 256 on v6e/v7x
        self.out_dtype = out_dtype

        if self.n_fft % self.hop_length != 0 or self.n_fft // self.hop_length > 8:
            # TODO(synk): general hop lengths need a different in-kernel framing scheme.
            raise NotImplementedError("kernel framing requires hop_length | n_fft (ratio <= 8)")
        self.frames_per_fft = self.n_fft // self.hop_length

        self.n_freq = self.n_fft // 2 + 1
        self.n_freq_p = _round_up(self.n_freq, 128)       # lane-dense freq axis
        self.n_mels_p = _round_up(self.n_mels, 128)       # lane-dense mel axis

        window = _padded_hann(self.n_fft, self.win_length)
        basis = _windowed_dft_basis(self.n_fft, self.n_freq_p, window)   # (n_fft, 2*n_freq_p)
        fb = np.zeros((self.n_freq_p, self.n_mels_p), np.float32)
        fb[: self.n_freq, : self.n_mels] = _mel_filterbank(self.n_freq, self.n_mels, sample_rate)

        # Fuse StandardScaler ((x-mean)/sqrt(var+eps)) + MinMaxScaler into one per-mel affine.
        fr_min, fr_max = feature_range
        mean = np.broadcast_to(np.asarray(running_mean), (self.n_mels,)).astype(np.float32)
        var = np.broadcast_to(np.asarray(running_var), (self.n_mels,)).astype(np.float32)
        rmin = np.broadcast_to(np.asarray(running_min), (self.n_mels,)).astype(np.float32)
        rmax = np.broadcast_to(np.asarray(running_max), (self.n_mels,)).astype(np.float32)
        s_std = 1.0 / np.sqrt(var + eps)
        s_mm = (fr_max - fr_min) / (rmax - rmin)
        sb = np.zeros((8, self.n_mels_p), np.float32)
        sb[0, : self.n_mels] = s_std * s_mm
        sb[1, : self.n_mels] = (-mean * s_std - rmin) * s_mm + fr_min

        self._basis = jnp.asarray(basis, basis_dtype)     # bf16 by default (f32 accumulate)
        self._fb = jnp.asarray(fb, basis_dtype)
        self._sb = jnp.asarray(sb, jnp.float32)
        self.fr_min, self.fr_max = float(fr_min), float(fr_max)

        # Generation-aware VMEM cap: leave >= 16 MiB headroom below physical VMEM
        # (v7x has only 64 MiB physical; v5e/v6e have 128 MiB).
        try:
            phys = int(pltpu.get_tpu_info().vmem_capacity_bytes)
        except Exception:
            phys = 64 << 20
        self._vmem_cap = max(32 << 20, phys - (16 << 20))

    def __call__(self, x, inverse: bool = False):
        if inverse:
            # TODO(synk): InverseMelScale + GriffinLim inverse path not implemented.
            raise NotImplementedError("inverse transform not implemented in the Pallas port")
        return self.transform(x)

    def transform(self, x):
        x = jnp.asarray(x, jnp.float32)
        batch_shape = x.shape[:-1]
        T = x.shape[-1]
        BC = int(np.prod(batch_shape)) if batch_shape else 1
        n_fft, hop, fpf = self.n_fft, self.hop_length, self.frames_per_fft
        n_frames = 1 + T // hop                           # torch.stft, center=True

        ft = _round_up(min(self.frame_tile, _round_up(n_frames, 8)), 8)
        n_tiles = -(-n_frames // ft)
        n_frames_p = n_tiles * ft
        n_rows_p = n_frames_p + 8                         # room for the <=7 shifted halo rows

        # center=True reflect padding (torchaudio Spectrogram default), then a zero
        # tail so the waveform reshapes exactly to (n_rows_p, hop).  Real frames never
        # read the zero tail; padded frames are sliced off below.
        xf = x.reshape(BC, T)
        xp = jnp.pad(xf, ((0, 0), (n_fft // 2, n_fft // 2)), mode="reflect")
        xp = jnp.pad(xp, ((0, 0), (0, n_rows_p * hop - xp.shape[-1])))
        w2d = xp.reshape(BC, n_rows_p, hop)
        # frames_per_fft hop-row-shifted views: chunk r of frame f is ws[:, r, f, :].
        # This keeps every in-kernel chunk load (8,128)-aligned (no concat / relayout).
        ws = jnp.stack([w2d[:, r:r + n_frames_p, :] for r in range(fpf)], axis=1)

        kernel = functools.partial(
            _mel_transform_kernel, hop=hop, frames_per_fft=fpf,
            n_freq_p=self.n_freq_p, log_eps=self.log_eps, clip=self.clip,
            fr_min=self.fr_min, fr_max=self.fr_max)

        # VMEM budget: constants (double-buffered by the pipeline), double-buffered
        # input/output tiles, plus in-kernel temporaries (acc/mag/mel/casts).
        itemsize = jnp.dtype(self._basis.dtype).itemsize
        const_bytes = (self._basis.size + self._fb.size) * itemsize + self._sb.size * 4
        in_tile = fpf * ft * hop * 4
        out_tile = ft * self.n_mels_p * jnp.dtype(self.out_dtype).itemsize
        work = ft * (8 * self.n_freq_p + 4 * self.n_mels_p + 2 * fpf * hop) * 2
        vmem_bytes = int(min(self._vmem_cap,
                             max(32 << 20,
                                 2 * const_bytes + 2 * (in_tile + out_tile) + work)))

        out = pl.pallas_call(
            kernel,
            out_shape=jax.ShapeDtypeStruct((BC, n_frames_p, self.n_mels_p), self.out_dtype),
            grid=(BC, n_tiles),
            in_specs=[
                pl.BlockSpec((None, fpf, ft, hop), lambda i, t: (i, 0, t, 0)),
                # Constant index maps: basis / filterbank / affine stay VMEM-resident
                # across grid steps (no per-step re-DMA of the large constants).
                pl.BlockSpec((n_fft, 2 * self.n_freq_p), lambda i, t: (0, 0)),
                pl.BlockSpec((self.n_freq_p, self.n_mels_p), lambda i, t: (0, 0)),
                pl.BlockSpec((8, self.n_mels_p), lambda i, t: (0, 0)),
            ],
            out_specs=pl.BlockSpec((None, ft, self.n_mels_p), lambda i, t: (i, t, 0)),
            compiler_params=pltpu.CompilerParams(
                dimension_semantics=("parallel", "parallel"),
                vmem_limit_bytes=vmem_bytes),
        )(ws, self._basis, self._fb, self._sb)

        out = out[:, :n_frames, : self.n_mels]            # drop frame / mel-lane padding
        out = jnp.transpose(out, (0, 2, 1))               # cheap XLA transpose outside kernel
        return out.reshape(batch_shape + (self.n_mels, n_frames))


# ----------------------------------------------------------------------------- pure-JAX reference


def _reference_transform(x, *, sample_rate, n_fft, win_length, hop_length, n_mels,
                         feature_range, eps, clip, running_mean, running_var,
                         running_min, running_max, log_eps=1e-5):
    x = jnp.asarray(x, jnp.float32)
    batch_shape = x.shape[:-1]
    T = x.shape[-1]
    n_freq = n_fft // 2 + 1
    window = _padded_hann(n_fft, win_length)
    n = np.arange(n_fft, dtype=np.float64)[:, None]
    k = np.arange(n_freq, dtype=np.float64)[None, :]
    ang = 2.0 * np.pi * n * k / n_fft
    br = jnp.asarray(window[:, None] * np.cos(ang), jnp.float32)
    bi = jnp.asarray(-(window[:, None] * np.sin(ang)), jnp.float32)
    fb = jnp.asarray(_mel_filterbank(n_freq, n_mels, sample_rate), jnp.float32)

    xf = x.reshape(-1, T)
    xp = jnp.pad(xf, ((0, 0), (n_fft // 2, n_fft // 2)), mode="reflect")
    n_frames = 1 + T // hop_length
    idx = np.arange(n_frames)[:, None] * hop_length + np.arange(n_fft)[None, :]
    frames = xp[:, idx]                                   # (BC, n_frames, n_fft)
    re = jnp.einsum("btn,nk->btk", frames, br, precision="highest")
    im = jnp.einsum("btn,nk->btk", frames, bi, precision="highest")
    mel = jnp.einsum("btk,km->btm", jnp.sqrt(re * re + im * im), fb, precision="highest")
    y = jnp.log(mel + log_eps)
    y = (y - running_mean) / jnp.sqrt(running_var + eps)
    y = (y - running_min) / (running_max - running_min)
    y = y * (feature_range[1] - feature_range[0]) + feature_range[0]
    if clip:
        y = jnp.clip(y, feature_range[0], feature_range[1])
    y = jnp.transpose(y, (0, 2, 1))
    return y.reshape(batch_shape + (n_mels, n_frames))


# ----------------------------------------------------------------------------- main


if __name__ == "__main__":
    key = jax.random.PRNGKey(0)
    B, C, T = 2, 2, 4096
    sample_rate, n_fft, n_mels = 16000, 256, 64
    hop = n_fft // 2
    stats = dict(running_mean=3.0, running_var=4.0, running_min=-2.0, running_max=2.0)

    x = jax.random.normal(key, (B, C, T), dtype=jnp.float32)

    common = dict(sample_rate=sample_rate, n_fft=n_fft, n_mels=n_mels,
                  feature_range=(-1.0, 1.0), eps=1e-5, clip=True, frame_tile=256, **stats)

    ref = jax.block_until_ready(_reference_transform(
        x, sample_rate=sample_rate, n_fft=n_fft, win_length=n_fft, hop_length=hop,
        n_mels=n_mels, feature_range=(-1.0, 1.0), eps=1e-5, clip=True, **stats))

    n_frames = 1 + T // hop

    # 1) f32-basis run: tighter structural check against the f32 reference.
    t_f32 = PallasTransforms(basis_dtype=jnp.float32, **common)
    out32 = jax.block_until_ready(jax.jit(t_f32.transform)(x))
    assert out32.shape == (B, C, n_mels, n_frames), out32.shape
    err32 = jnp.abs(out32 - ref)
    max32, mean32 = float(jnp.max(err32)), float(jnp.mean(err32))
    assert max32 < 3e-2 and mean32 < 5e-3, (max32, mean32)

    # 2) Default (bfloat16 basis, f32 MXU accumulation): the fast path.
    t_bf16 = PallasTransforms(**common)
    out = jax.block_until_ready(jax.jit(t_bf16.transform)(x))
    assert out.shape == (B, C, n_mels, n_frames), out.shape
    err = jnp.abs(out - ref)
    max_err, mean_err = float(jnp.max(err)), float(jnp.mean(err))
    assert max_err < 1e-1 and mean_err < 1.5e-2, (max_err, mean_err)

    print("KERNEL_OK")
</pallas_src>

<mosaic_0001>
module attributes {stable_mosaic.version = 11 : i64} {
  func.func @_mel_transform_kernel(%arg0: i32, %arg1: i32, %arg2: memref<1x2x40x128xf32, #tpu.memory_space<vmem>>, %arg3: memref<256x512xf32, #tpu.memory_space<vmem>>, %arg4: memref<256x128xf32, #tpu.memory_space<vmem>>, %arg5: memref<8x128xf32, #tpu.memory_space<vmem>>, %arg6: memref<1x40x128xf32, #tpu.memory_space<vmem>>) attributes {dimension_semantics = [#tpu.dimension_semantics<parallel>, #tpu.dimension_semantics<parallel>], iteration_bounds = array<i64: 4, 1>, scalar_prefetch = 0 : i64, scratch_operands = 0 : i64, tpu.core_type = #tpu.core_type<tc>, window_params = [{transform_indices = @transform_0, window_bounds = array<i64: 1, 2, 40, 128>}, {pipeline_mode = #tpu.pipeline_mode<synchronous>, transform_indices = @transform_1, window_bounds = array<i64: 256, 512>}, {pipeline_mode = #tpu.pipeline_mode<synchronous>, transform_indices = @transform_2, window_bounds = array<i64: 256, 128>}, {pipeline_mode = #tpu.pipeline_mode<synchronous>, transform_indices = @transform_3, window_bounds = array<i64: 8, 128>}, {transform_indices = @transform_4, window_bounds = array<i64: 1, 40, 128>}]} {
    %c0 = arith.constant 0 : index
    %c0_0 = arith.constant 0 : index
    %0 = vector.load %arg5[%c0, %c0_0] : memref<8x128xf32, #tpu.memory_space<vmem>>, vector<1x128xf32>
    %c1 = arith.constant 1 : index
    %c0_1 = arith.constant 0 : index
    %1 = vector.load %arg5[%c1, %c0_1] : memref<8x128xf32, #tpu.memory_space<vmem>>, vector<1x128xf32>
    %c0_2 = arith.constant 0 : index
    %c0_3 = arith.constant 0 : index
    %c0_4 = arith.constant 0 : index
    %c0_5 = arith.constant 0 : index
    %2 = vector.load %arg2[%c0_2, %c0_3, %c0_4, %c0_5] : memref<1x2x40x128xf32, #tpu.memory_space<vmem>>, vector<1x1x40x128xf32>
    %3 = vector.shape_cast %2 : vector<1x1x40x128xf32> to vector<40x128xf32>
    %c0_6 = arith.constant 0 : index
    %c0_7 = arith.constant 0 : index
    %4 = vector.load %arg3[%c0_6, %c0_7] : memref<256x512xf32, #tpu.memory_space<vmem>>, vector<128x512xf32>
    %cst = arith.constant dense<0.000000e+00> : vector<40x512xf32>
    %5 = tpu.matmul %3, %4, %cst {dimension_numbers = #tpu.dot_dimension_numbers<[1], [0], [0], [1], [0, 0, 1, 1], [], []>} : vector<40x128xf32>, vector<128x512xf32>, vector<40x512xf32> -> vector<40x512xf32>
    %c0_8 = arith.constant 0 : index
    %c1_9 = arith.constant 1 : index
    %c0_10 = arith.constant 0 : index
    %c0_11 = arith.constant 0 : index
    %6 = vector.load %arg2[%c0_8, %c1_9, %c0_10, %c0_11] : memref<1x2x40x128xf32, #tpu.memory_space<vmem>>, vector<1x1x40x128xf32>
    %7 = vector.shape_cast %6 : vector<1x1x40x128xf32> to vector<40x128xf32>
    %c128 = arith.constant 128 : index
    %c0_12 = arith.constant 0 : index
    %8 = vector.load %arg3[%c128, %c0_12] : memref<256x512xf32, #tpu.memory_space<vmem>>, vector<128x512xf32>
    %cst_13 = arith.constant dense<0.000000e+00> : vector<40x512xf32>
    %9 = tpu.matmul %7, %8, %cst_13 {dimension_numbers = #tpu.dot_dimension_numbers<[1], [0], [0], [1], [0, 0, 1, 1], [], []>} : vector<40x128xf32>, vector<128x512xf32>, vector<40x512xf32> -> vector<40x512xf32>
    %10 = arith.addf %5, %9 : vector<40x512xf32>
    %11 = vector.extract_strided_slice %10 {offsets = [0, 0], sizes = [40, 256], strides = [1, 1]} : vector<40x512xf32> to vector<40x256xf32>
    %12 = vector.extract_strided_slice %10 {offsets = [0, 256], sizes = [40, 256], strides = [1, 1]} : vector<40x512xf32> to vector<40x256xf32>
    %13 = arith.mulf %11, %11 : vector<40x256xf32>
    %14 = arith.mulf %12, %12 : vector<40x256xf32>
    %15 = arith.addf %13, %14 : vector<40x256xf32>
    %16 = math.sqrt %15 : vector<40x256xf32>
    %c0_14 = arith.constant 0 : index
    %c0_15 = arith.constant 0 : index
    %17 = vector.load %arg4[%c0_14, %c0_15] : memref<256x128xf32, #tpu.memory_space<vmem>>, vector<256x128xf32>
    %cst_16 = arith.constant dense<0.000000e+00> : vector<40x128xf32>
    %18 = tpu.matmul %16, %17, %cst_16 {dimension_numbers = #tpu.dot_dimension_numbers<[1], [0], [0], [1], [0, 0, 1, 1], [], []>} : vector<40x256xf32>, vector<256x128xf32>, vector<40x128xf32> -> vector<40x128xf32>
    %cst_17 = arith.constant 9.99999974E-6 : f32
    %19 = vector.broadcast %cst_17 : f32 to vector<40x128xf32>
    %20 = arith.addf %18, %19 : vector<40x128xf32>
    %21 = math.log %20 : vector<40x128xf32>
    %22 = vector.broadcast %0 : vector<1x128xf32> to vector<40x128xf32>
    %23 = arith.mulf %21, %22 : vector<40x128xf32>
    %24 = vector.broadcast %1 : vector<1x128xf32> to vector<40x128xf32>
    %25 = arith.addf %23, %24 : vector<40x128xf32>
    %cst_18 = arith.constant -1.000000e+00 : f32
    %cst_19 = arith.constant 1.000000e+00 : f32
    %26 = vector.broadcast %cst_18 : f32 to vector<40x128xf32>
    %27 = arith.maximumf %26, %25 : vector<40x128xf32>
    %28 = vector.broadcast %cst_19 : f32 to vector<40x128xf32>
    %29 = arith.minimumf %28, %27 : vector<40x128xf32>
    %c0_20 = arith.constant 0 : index
    %c0_21 = arith.constant 0 : index
    %c0_22 = arith.constant 0 : index
    %30 = vector.load %arg6[%c0_20, %c0_21, %c0_22] : memref<1x40x128xf32, #tpu.memory_space<vmem>>, vector<1x40x128xf32>
    %31 = vector.shape_cast %30 : vector<1x40x128xf32> to vector<40x128xf32>
    %32 = vector.shape_cast %29 : vector<40x128xf32> to vector<1x40x128xf32>
    tpu.vector_store %arg6[%c0_20, %c0_21, %c0_22], %32 {strides = array<i32>} : memref<1x40x128xf32, #tpu.memory_space<vmem>>, vector<1x40x128xf32>,
    return
  }
  func.func @transform_0(%arg0: i32, %arg1: i32) -> (i32, i32, i32, i32) {
    %c0_i32 = arith.constant 0 : i32
    %c0_i32_0 = arith.constant 0 : i32
    %c0_i32_1 = arith.constant 0 : i32
    return %arg0, %c0_i32, %arg1, %c0_i32_0 : i32, i32, i32, i32
  }
  func.func @transform_1(%arg0: i32, %arg1: i32) -> (i32, i32) {
    %c0_i32 = arith.constant 0 : i32
    %c0_i32_0 = arith.constant 0 : i32
    %c0_i32_1 = arith.constant 0 : i32
    return %c0_i32, %c0_i32_0 : i32, i32
  }
  func.func @transform_2(%arg0: i32, %arg1: i32) -> (i32, i32) {
    %c0_i32 = arith.constant 0 : i32
    %c0_i32_0 = arith.constant 0 : i32
    %c0_i32_1 = arith.constant 0 : i32
    return %c0_i32, %c0_i32_0 : i32, i32
  }
  func.func @transform_3(%arg0: i32, %arg1: i32) -> (i32, i32) {
    %c0_i32 = arith.constant 0 : i32
    %c0_i32_0 = arith.constant 0 : i32
    %c0_i32_1 = arith.constant 0 : i32
    return %c0_i32, %c0_i32_0 : i32, i32
  }
  func.func @transform_4(%arg0: i32, %arg1: i32) -> (i32, i32, i32) {
    %c0_i32 = arith.constant 0 : i32
    %c0_i32_0 = arith.constant 0 : i32
    return %arg0, %arg1, %c0_i32 : i32, i32, i32
  }
}

</mosaic_0001>

<llo_original>
// kernel: transform.1
$region0: #{transform.1}
  #allocation0 [shape = 'u32[]', space=smem, size = 0x4, offset = 0x4, fixed_abs, tag = 'smem constant byte address 0x4 - core index']
  #allocation1 [shape = 'u32[144,128]{1,0:T(1,128)}', space=vmem, size = 0x12000, scoped, tag = 'internal scratch']
  %s0 = inlined_call_operand.vmem [shape: f32[4,2,40,128], index: 0, kind: input, shape index: {}]
  %s1 = inlined_call_operand.vmem [shape: f32[256,512], index: 1, kind: input, shape index: {}]
  %s2 = inlined_call_operand.vmem [shape: f32[256,128], index: 2, kind: input, shape index: {}]
  %s3 = inlined_call_operand.vmem [shape: f32[8,128], index: 3, kind: input, shape index: {}]
  %s4 = inlined_call_operand.vmem [shape: f32[4,40,128], index: 4, kind: output, shape index: {}]
  %s5 = sld [smem:[#allocation0]]
  $region49: #{transform.1} parent=0
    _
  %s7 = ssub.s32 1, %s5
  %s8 = scalar_select 0, %s7, %s5
  loop: start=0, step=1, limit=6
  $region2: #{transform.1} parent=0 // loop_pre_header
    _
  $region3: #{transform.1} parent=0 // loop_header
    %s10 = sphi 0, %s14
    %p11 = scmp.ge.s32.totalorder %s10, 6
    %s17 = sphi 0, %s29
    %s18 = sphi 0, %s25
    %s19 = sphi 0, %s17
    %s20 = sphi 0, %s18
    %s21 = sphi 0, %s19
    %s22 = sphi 0, %s20
    %s34 = sphi 0, %s36
    %s37 = sphi 0, %s34
    %s38 = sphi 0, %s37
    %s54 = sphi 0, %s38
    %s58 = sphi 0, %s58
    %s60 = sphi 0, %s58
    %s61 = sphi 0, %s60
    %s75 = sphi 0, %s61
    %s79 = sphi 0, %s79
    %s81 = sphi 0, %s79
    %s82 = sphi 0, %s81
    %s96 = sphi 0, %s82
    %s100 = sphi 0, %s100
    %s102 = sphi 0, %s100
    %s103 = sphi 0, %s102
    %s117 = sphi 0, %s103
    %s125 = sphi 0, %s127
    %s128 = sphi 0, %s125
    %s129 = sphi 0, %s128
    %s145 = sphi 0, %s129
  $region4: #{transform.1} parent=0 // loop_header_branch
    %13 = sbr.rel (%p11) target = $region8
  $region5: #{transform.1} parent=0 // loop_body
    %s15 = ssub.s32 %s10, 1
    %s16 = ssub.s32 %s10, 2
    %s23 = sadd.s32 1, %s18
    %p24 = scmp.ge.s32.totalorder %s23, 1
    %s25 = scalar_select %p24, 0, %s23
    %s26 = sadd.s32 1, %s17
    %s27 = scalar_select %p24, %s26, %s17
    %p28 = scmp.ge.s32.totalorder %s27, 4
    %s29 = scalar_select %p28, 0, %s27
    %s30 = ssub.s32 %s17, %s29
    %s31 = ssub.s32 %s18, %s25
    %s32 = sor.u32 %s30, %s31
    %p33 = scmp.eq.s32.totalorder %s32, 0
    %s35 = sadd.s32 %s34, 1
    %s36 = scalar_select %p33, %s34, %s35
    %p39 = pneg %p33
    %p40 = scmp.eq.s32.totalorder %s10, 3
    %p41 = por %p39, %p40
    %p42 = scmp.ne.s32.totalorder %s34, %s37
    %p43 = scmp.eq.s32.totalorder %s10, 0
    %p44 = por %p42, %p43
    %p45 = scmp.ne.s32.totalorder %s34, %s37
    %p46 = scmp.eq.s32.totalorder %s15, 3
    %p47 = por %p45, %p46
    %p48 = scmp.ne.s32.totalorder %s37, %s38
    %p49 = scmp.eq.s32.totalorder %s15, 0
    %p50 = por %p48, %p49
    %p51 = scmp.ne.s32.totalorder %s37, %s38
    %p52 = scmp.eq.s32.totalorder %s16, 3
    %p53 = por %p51, %p52
    %p55 = scmp.ne.s32.totalorder %s38, %s54
    %p56 = scmp.eq.s32.totalorder %s16, 0
    %p57 = por %p55, %p56
    %s59 = sadd.s32 %s58, 1
    %p62 = scmp.eq.s32.totalorder %s10, 3
    %p63 = scmp.ne.s32.totalorder %s58, %s60
    %p64 = scmp.eq.s32.totalorder %s10, 0
    %p65 = por %p63, %p64
    %p66 = scmp.ne.s32.totalorder %s58, %s60
    %p67 = scmp.eq.s32.totalorder %s15, 3
    %p68 = por %p66, %p67
    %p69 = scmp.ne.s32.totalorder %s60, %s61
    %p70 = scmp.eq.s32.totalorder %s15, 0
    %p71 = por %p69, %p70
    %p72 = scmp.ne.s32.totalorder %s60, %s61
    %p73 = scmp.eq.s32.totalorder %s16, 3
    %p74 = por %p72, %p73
    %p76 = scmp.ne.s32.totalorder %s61, %s75
    %p77 = scmp.eq.s32.totalorder %s16, 0
    %p78 = por %p76, %p77
    %s80 = sadd.s32 %s79, 1
    %p83 = scmp.eq.s32.totalorder %s10, 3
    %p84 = scmp.ne.s32.totalorder %s79, %s81
    %p85 = scmp.eq.s32.totalorder %s10, 0
    %p86 = por %p84, %p85
    %p87 = scmp.ne.s32.totalorder %s79, %s81
    %p88 = scmp.eq.s32.totalorder %s15, 3
    %p89 = por %p87, %p88
    %p90 = scmp.ne.s32.totalorder %s81, %s82
    %p91 = scmp.eq.s32.totalorder %s15, 0
    %p92 = por %p90, %p91
    %p93 = scmp.ne.s32.totalorder %s81, %s82
    %p94 = scmp.eq.s32.totalorder %s16, 3
    %p95 = por %p93, %p94
    %p97 = scmp.ne.s32.totalorder %s82, %s96
    %p98 = scmp.eq.s32.totalorder %s16, 0
    %p99 = por %p97, %p98
    %s101 = sadd.s32 %s100, 1
    %p104 = scmp.eq.s32.totalorder %s10, 3
    %p105 = scmp.ne.s32.totalorder %s100, %s102
    %p106 = scmp.eq.s32.totalorder %s10, 0
    %p107 = por %p105, %p106
    %p108 = scmp.ne.s32.totalorder %s100, %s102
    %p109 = scmp.eq.s32.totalorder %s15, 3
    %p110 = por %p108, %p109
    %p111 = scmp.ne.s32.totalorder %s102, %s103
    %p112 = scmp.eq.s32.totalorder %s15, 0
    %p113 = por %p111, %p112
    %p114 = scmp.ne.s32.totalorder %s102, %s103
    %p115 = scmp.eq.s32.totalorder %s16, 3
    %p116 = por %p114, %p115
    %p118 = scmp.ne.s32.totalorder %s103, %s117
    %p119 = scmp.eq.s32.totalorder %s16, 0
    %p120 = por %p118, %p119
    %s121 = ssub.s32 %s17, %s29
    %s122 = ssub.s32 %s18, %s25
    %s123 = sor.u32 %s121, %s122
    %p124 = scmp.eq.s32.totalorder %s123, 0
    %s126 = sadd.s32 %s125, 1
    %s127 = scalar_select %p124, %s125, %s126
    %p130 = pneg %p124
    %p131 = scmp.eq.s32.totalorder %s10, 3
    %p132 = por %p130, %p131
    %p133 = scmp.ne.s32.totalorder %s125, %s128
    %p134 = scmp.eq.s32.totalorder %s10, 0
    %p135 = por %p133, %p134
    %p136 = scmp.ne.s32.totalorder %s125, %s128
    %p137 = scmp.eq.s32.totalorder %s15, 3
    %p138 = por %p136, %p137
    %p139 = scmp.ne.s32.totalorder %s128, %s129
    %p140 = scmp.eq.s32.totalorder %s15, 0
    %p141 = por %p139, %p140
    %p142 = scmp.ne.s32.totalorder %s128, %s129
    %p143 = scmp.eq.s32.totalorder %s16, 3
    %p144 = por %p142, %p143
    %p146 = scmp.ne.s32.totalorder %s129, %s145
    %p147 = scmp.eq.s32.totalorder %s16, 0
    %p148 = por %p146, %p147
    %p149 = scmp.le.s32.totalorder 1, %s10
    %p150 = scmp.lt.s32.totalorder %s10, 5
    %p151 = pnand %p149, %p150
    %p152 = pneg %p151
    // Predicated region
    $region9: #{transform.1} parent=5 // pred_check
      _
    $region10: #{transform.1} parent=5 // pred_check_branch
      %154 = sbr.rel (%p151) target = $region12
    $region11: #{transform.1} parent=5 // pred_region
      %s155 = ssub.s32 %s10, 1
      // Predicated region
      $region13: #{transform.1} parent=11 // pred_check
        %p156 = pneg %p71
      $region14: #{transform.1} parent=11 // pred_check_branch
        %158 = sbr.rel (%p156) target = $region16
      $region15: #{transform.1} parent=11 // pred_region
        _
      $region16: #{transform.1} parent=11 // pred_fallthru
        _
      // Predicated region
      $region17: #{transform.1} parent=11 // pred_check
        %p159 = pneg %p92
      $region18: #{transform.1} parent=11 // pred_check_branch
        %161 = sbr.rel (%p159) target = $region20
      $region19: #{transform.1} parent=11 // pred_region
        _
      $region20: #{transform.1} parent=11 // pred_fallthru
        _
      // Predicated region
      $region21: #{transform.1} parent=11 // pred_check
        %p162 = pneg %p113
      $region22: #{transform.1} parent=11 // pred_check_branch
        %164 = sbr.rel (%p162) target = $region24
      $region23: #{transform.1} parent=11 // pred_region
        _
      $region24: #{transform.1} parent=11 // pred_fallthru
        _
    $region12: #{transform.1} parent=5 // pred_fallthru
      _
    %p165 = scmp.lt.s32.totalorder %s10, 4
    // Predicated region
    $region25: #{transform.1} parent=5 // pred_check
      %p166 = pneg %p165
    $region26: #{transform.1} parent=5 // pred_check_branch
      %168 = sbr.rel (%p166) target = $region28
    $region27: #{transform.1} parent=5 // pred_region
      // Predicated region
      $region29: #{transform.1} parent=27 // pred_check
        %p169 = pneg %p44
      $region30: #{transform.1} parent=27 // pred_check_branch
        %171 = sbr.rel (%p169) target = $region32
      $region31: #{transform.1} parent=27 // pred_region
        %s172 = smul.u32 5, %s18
        %p173 = scmp.lt.s32.totalorder %s17, 3
        %s174 = scalar_select %p173, %s17, 3
        %p175 = scmp.lt.s32.totalorder %s172, 4
        %s176 = scalar_select %p175, %s172, 4
        %s177 = smul.addr %s174, 10
        %s178 = sadd.s32 %s176, %s177
        %s179 = smul.addr %s178, 8
        %s180 = scalar_lea.vmem %s0, %s179
        %s181 = smul.u32 5, %s18
      $region32: #{transform.1} parent=27 // pred_fallthru
        _
    $region28: #{transform.1} parent=5 // pred_fallthru
      _
    %p182 = scmp.le.s32.totalorder 1, %s10
    %p183 = scmp.lt.s32.totalorder %s10, 5
    %p184 = pnand %p182, %p183
    %p185 = pneg %p184
    // Predicated region
    $region33: #{transform.1} parent=5 // pred_check
      _
    $region34: #{transform.1} parent=5 // pred_check_branch
      %187 = sbr.rel (%p184) target = $region36
    $region35: #{transform.1} parent=5 // pred_region
      %s188 = ssub.s32 %s10, 1
      %s189 = smul.u32 5, %s20
      %p190 = scmp.lt.s32.totalorder %s19, 3
      %s191 = scalar_select %p190, %s19, 3
      %p192 = scmp.lt.s32.totalorder %s189, 4
      %s193 = scalar_select %p192, %s189, 4
      %s194 = smul.addr %s191, 10
      %s195 = sadd.s32 %s193, %s194
      %s196 = smul.addr %s195, 8
      %s197 = scalar_lea.vmem %s0, %s196
      %p198 = pneg %p50
      %p199 = pneg %p47
      %p200 = pneg %p71
      %p201 = pneg %p68
      %p202 = pneg %p92
      %p203 = pneg %p89
      %p204 = pneg %p113
      %p205 = pneg %p110
      %p206 = pneg %p141
      %p207 = pneg %p138
      %s208 = smul.u32 5, %s20
      %p209 = scmp.lt.s32.totalorder %s19, 3
      %s210 = scalar_select %p209, %s19, 3
      %p211 = scmp.lt.s32.totalorder %s208, 4
      %s212 = scalar_select %p211, %s208, 4
      %s213 = smul.addr %s210, 5
      %s214 = sadd.s32 %s212, %s213
      %s215 = smul.addr %s214, 8
      %s216 = scalar_lea.vmem %s4, %s215
      %s217 = smul.u32 5, %s20
      %p218 = scmp.lt.s32.totalorder %s19, 3
      %s219 = scalar_select %p218, %s19, 3
      %p220 = scmp.lt.s32.totalorder %s217, 4
      %s221 = scalar_select %p220, %s217, 4
      %s222 = smul.addr %s219, 10
      %s223 = sadd.s32 %s221, %s222
      %s224 = smul.addr %s223, 8
      %s225 = scalar_lea.vmem %s0, %s224
      %s226 = smul.u32 5, %s20
      %s227 = smul.u32 5, %s20
      %p228 = scmp.lt.s32.totalorder %s19, 3
      %s229 = scalar_select %p228, %s19, 3
      %p230 = scmp.lt.s32.totalorder %s227, 4
      %s231 = scalar_select %p230, %s227, 4
      %s232 = smul.addr %s229, 5
      %s233 = sadd.s32 %s231, %s232
      %s234 = smul.addr %s233, 8
      %s235 = scalar_lea.vmem %s4, %s234
      %s236 = smul.u32 5, %s20
      %v237 = vld [vmem:[%s3] sm:$0x1]
      %v238 = vld [vmem:[%s3 + $0x1] sm:$0x1]
      %v239 = vld [vmem:[%s225] sm:$0xff]
      %v240 = vld [vmem:[%s225 + $0x8] sm:$0xff]
      %v241 = vld [vmem:[%s225 + $0x10] sm:$0xff]
      %v242 = vld [vmem:[%s225 + $0x18] sm:$0xff]
      %v243 = vld [vmem:[%s225 + $0x20] sm:$0xff]
      %v244 = vld [vmem:[%s1] sm:$0xff]
      %v245 = vld [vmem:[%s1 + $0x8] sm:$0xff]
      %v246 = vld [vmem:[%s1 + $0x10] sm:$0xff]
      %v247 = vld [vmem:[%s1 + $0x18] sm:$0xff]
      %v248 = vld [vmem:[%s1 + $0x20] sm:$0xff]
      %v249 = vld [vmem:[%s1 + $0x28] sm:$0xff]
      %v250 = vld [vmem:[%s1 + $0x30] sm:$0xff]
      %v251 = vld [vmem:[%s1 + $0x38] sm:$0xff]
      %v252 = vld [vmem:[%s1 + $0x40] sm:$0xff]
      %v253 = vld [vmem:[%s1 + $0x48] sm:$0xff]
      %v254 = vld [vmem:[%s1 + $0x50] sm:$0xff]
      %v255 = vld [vmem:[%s1 + $0x58] sm:$0xff]
      %v256 = vld [vmem:[%s1 + $0x60] sm:$0xff]
      %v257 = vld [vmem:[%s1 + $0x68] sm:$0xff]
      %v258 = vld [vmem:[%s1 + $0x70] sm:$0xff]
      %v259 = vld [vmem:[%s1 + $0x78] sm:$0xff]
      %v260 = vld [vmem:[%s1 + $0x80] sm:$0xff]
      %v261 = vld [vmem:[%s1 + $0x88] sm:$0xff]
      %v262 = vld [vmem:[%s1 + $0x90] sm:$0xff]
      %v263 = vld [vmem:[%s1 + $0x98] sm:$0xff]
      %v264 = vld [vmem:[%s1 + $0xa0] sm:$0xff]
      %v265 = vld [vmem:[%s1 + $0xa8] sm:$0xff]
      %v266 = vld [vmem:[%s1 + $0xb0] sm:$0xff]
      %v267 = vld [vmem:[%s1 + $0xb8] sm:$0xff]
      %v268 = vld [vmem:[%s1 + $0xc0] sm:$0xff]
      %v269 = vld [vmem:[%s1 + $0xc8] sm:$0xff]
      %v270 = vld [vmem:[%s1 + $0xd0] sm:$0xff]
      %v271 = vld [vmem:[%s1 + $0xd8] sm:$0xff]
      %v272 = vld [vmem:[%s1 + $0xe0] sm:$0xff]
      %v273 = vld [vmem:[%s1 + $0xe8] sm:$0xff]
      %v274 = vld [vmem:[%s1 + $0xf0] sm:$0xff]
      %v275 = vld [vmem:[%s1 + $0xf8] sm:$0xff]
      %v276 = vld [vmem:[%s1 + $0x100] sm:$0xff]
      %v277 = vld [vmem:[%s1 + $0x108] sm:$0xff]
      %v278 = vld [vmem:[%s1 + $0x110] sm:$0xff]
      %v279 = vld [vmem:[%s1 + $0x118] sm:$0xff]
      %v280 = vld [vmem:[%s1 + $0x120] sm:$0xff]
      %v281 = vld [vmem:[%s1 + $0x128] sm:$0xff]
      %v282 = vld [vmem:[%s1 + $0x130] sm:$0xff]
      %v283 = vld [vmem:[%s1 + $0x138] sm:$0xff]
      %v284 = vld [vmem:[%s1 + $0x140] sm:$0xff]
      %v285 = vld [vmem:[%s1 + $0x148] sm:$0xff]
      %v286 = vld [vmem:[%s1 + $0x150] sm:$0xff]
      %v287 = vld [vmem:[%s1 + $0x158] sm:$0xff]
      %v288 = vld [vmem:[%s1 + $0x160] sm:$0xff]
      %v289 = vld [vmem:[%s1 + $0x168] sm:$0xff]
      %v290 = vld [vmem:[%s1 + $0x170] sm:$0xff]
      %v291 = vld [vmem:[%s1 + $0x178] sm:$0xff]
      %v292 = vld [vmem:[%s1 + $0x180] sm:$0xff]
      %v293 = vld [vmem:[%s1 + $0x188] sm:$0xff]
      %v294 = vld [vmem:[%s1 + $0x190] sm:$0xff]
      %v295 = vld [vmem:[%s1 + $0x198] sm:$0xff]
      %v296 = vld [vmem:[%s1 + $0x1a0] sm:$0xff]
      %v297 = vld [vmem:[%s1 + $0x1a8] sm:$0xff]
      %v298 = vld [vmem:[%s1 + $0x1b0] sm:$0xff]
      %v299 = vld [vmem:[%s1 + $0x1b8] sm:$0xff]
      %v300 = vld [vmem:[%s1 + $0x1c0] sm:$0xff]
      %v301 = vld [vmem:[%s1 + $0x1c8] sm:$0xff]
      %v302 = vld [vmem:[%s1 + $0x1d0] sm:$0xff]
      %v303 = vld [vmem:[%s1 + $0x1d8] sm:$0xff]
      %v304 = vld [vmem:[%s1 + $0x1e0] sm:$0xff]
      %v305 = vld [vmem:[%s1 + $0x1e8] sm:$0xff]
      %v306 = vld [vmem:[%s1 + $0x1f0] sm:$0xff]
      %v307 = vld [vmem:[%s1 + $0x1f8] sm:$0xff]
      %s308 = scalar_lea.vmem %s225, 40
      %v309 = vld [vmem:[%s308] sm:$0xff]
      %v310 = vld [vmem:[%s308 + $0x8] sm:$0xff]
      %v311 = vld [vmem:[%s308 + $0x10] sm:$0xff]
      %v312 = vld [vmem:[%s308 + $0x18] sm:$0xff]
      %v313 = vld [vmem:[%s308 + $0x20] sm:$0xff]
      %v314 = vld [vmem:[%s1 + $0x200] sm:$0xff]
      %v315 = vld [vmem:[%s1 + $0x208] sm:$0xff]
      %v316 = vld [vmem:[%s1 + $0x210] sm:$0xff]
      %v317 = vld [vmem:[%s1 + $0x218] sm:$0xff]
      %v318 = vld [vmem:[%s1 + $0x220] sm:$0xff]
      %v319 = vld [vmem:[%s1 + $0x228] sm:$0xff]
      %v320 = vld [vmem:[%s1 + $0x230] sm:$0xff]
      %v321 = vld [vmem:[%s1 + $0x238] sm:$0xff]
      %v322 = vld [vmem:[%s1 + $0x240] sm:$0xff]
      %v323 = vld [vmem:[%s1 + $0x248] sm:$0xff]
      %v324 = vld [vmem:[%s1 + $0x250] sm:$0xff]
      %v325 = vld [vmem:[%s1 + $0x258] sm:$0xff]
      %v326 = vld [vmem:[%s1 + $0x260] sm:$0xff]
      %v327 = vld [vmem:[%s1 + $0x268] sm:$0xff]
      %v328 = vld [vmem:[%s1 + $0x270] sm:$0xff]
      %v329 = vld [vmem:[%s1 + $0x278] sm:$0xff]
      %v330 = vld [vmem:[%s1 + $0x280] sm:$0xff]
      %v331 = vld [vmem:[%s1 + $0x288] sm:$0xff]
      %v332 = vld [vmem:[%s1 + $0x290] sm:$0xff]
      %v333 = vld [vmem:[%s1 + $0x298] sm:$0xff]
      %v334 = vld [vmem:[%s1 + $0x2a0] sm:$0xff]
      %v335 = vld [vmem:[%s1 + $0x2a8] sm:$0xff]
      %v336 = vld [vmem:[%s1 + $0x2b0] sm:$0xff]
      %v337 = vld [vmem:[%s1 + $0x2b8] sm:$0xff]
      %v338 = vld [vmem:[%s1 + $0x2c0] sm:$0xff]
      %v339 = vld [vmem:[%s1 + $0x2c8] sm:$0xff]
      %v340 = vld [vmem:[%s1 + $0x2d0] sm:$0xff]
      %v341 = vld [vmem:[%s1 + $0x2d8] sm:$0xff]
      %v342 = vld [vmem:[%s1 + $0x2e0] sm:$0xff]
      %v343 = vld [vmem:[%s1 + $0x2e8] sm:$0xff]
      %v344 = vld [vmem:[%s1 + $0x2f0] sm:$0xff]
      %v345 = vld [vmem:[%s1 + $0x2f8] sm:$0xff]
      %v346 = vld [vmem:[%s1 + $0x300] sm:$0xff]
      %v347 = vld [vmem:[%s1 + $0x308] sm:$0xff]
      %v348 = vld [vmem:[%s1 + $0x310] sm:$0xff]
      %v349 = vld [vmem:[%s1 + $0x318] sm:$0xff]
      %v350 = vld [vmem:[%s1 + $0x320] sm:$0xff]
      %v351 = vld [vmem:[%s1 + $0x328] sm:$0xff]
      %v352 = vld [vmem:[%s1 + $0x330] sm:$0xff]
      %v353 = vld [vmem:[%s1 + $0x338] sm:$0xff]
      %v354 = vld [vmem:[%s1 + $0x340] sm:$0xff]
      %v355 = vld [vmem:[%s1 + $0x348] sm:$0xff]
      %v356 = vld [vmem:[%s1 + $0x350] sm:$0xff]
      %v357 = vld [vmem:[%s1 + $0x358] sm:$0xff]
      %v358 = vld [vmem:[%s1 + $0x360] sm:$0xff]
      %v359 = vld [vmem:[%s1 + $0x368] sm:$0xff]
      %v360 = vld [vmem:[%s1 + $0x370] sm:$0xff]
      %v361 = vld [vmem:[%s1 + $0x378] sm:$0xff]
      %v362 = vld [vmem:[%s1 + $0x380] sm:$0xff]
      %v363 = vld [vmem:[%s1 + $0x388] sm:$0xff]
      %v364 = vld [vmem:[%s1 + $0x390] sm:$0xff]
      %v365 = vld [vmem:[%s1 + $0x398] sm:$0xff]
      %v366 = vld [vmem:[%s1 + $0x3a0] sm:$0xff]
      %v367 = vld [vmem:[%s1 + $0x3a8] sm:$0xff]
      %v368 = vld [vmem:[%s1 + $0x3b0] sm:$0xff]
      %v369 = vld [vmem:[%s1 + $0x3b8] sm:$0xff]
      %v370 = vld [vmem:[%s1 + $0x3c0] sm:$0xff]
      %v371 = vld [vmem:[%s1 + $0x3c8] sm:$0xff]
      %v372 = vld [vmem:[%s1 + $0x3d0] sm:$0xff]
      %v373 = vld [vmem:[%s1 + $0x3d8] sm:$0xff]
      %v374 = vld [vmem:[%s1 + $0x3e0] sm:$0xff]
      %v375 = vld [vmem:[%s1 + $0x3e8] sm:$0xff]
      %v376 = vld [vmem:[%s1 + $0x3f0] sm:$0xff]
      %v377 = vld [vmem:[%s1 + $0x3f8] sm:$0xff]
      %378 = vmatprep.subr.mxu0 %v315
      %379 = vmatpush1.msra.mxu0 %v314
      %380 = vmatprep.subr.mxu0 %v319
      %381 = vmatpush1.msra.mxu0 %v318
      %382 = vmatprep.subr.mxu0 %v323
      %383 = vmatpush1.msra.mxu0 %v322
      %384 = vmatprep.subr.mxu0 %v327
      %385 = vmatpush1.msra.mxu0 %v326
      %386 = vmatprep.subr.mxu0 %v331
      %387 = vmatpush1.msra.mxu0 %v330
      %388 = vmatprep.subr.mxu0 %v335
      %389 = vmatpush1.msra.mxu0 %v334
      %390 = vmatprep.subr.mxu0 %v339
      %391 = vmatpush1.msra.mxu0 %v338
      %392 = vmatprep.subr.mxu0 %v343
      %393 = vmatpush1.msra.mxu0 %v342
      %394 = vmatprep.subr.mxu0 %v347
      %395 = vmatpush1.msra.mxu0 %v346
      %396 = vmatprep.subr.mxu0 %v351
      %397 = vmatpush1.msra.mxu0 %v350
      %398 = vmatprep.subr.mxu0 %v355
      %399 = vmatpush1.msra.mxu0 %v354
      %400 = vmatprep.subr.mxu0 %v359
      %401 = vmatpush1.msra.mxu0 %v358
      %402 = vmatprep.subr.mxu0 %v363
      %403 = vmatpush1.msra.mxu0 %v362
      %404 = vmatprep.subr.mxu0 %v367
      %405 = vmatpush1.msra.mxu0 %v366
      %406 = vmatprep.subr.mxu0 %v371
      %407 = vmatpush1.msra.mxu0 %v370
      %408 = vmatprep.subr.mxu0 %v375
      %409 = vmatpush1.msra.mxu0 %v374
      %410 = vmatprep.subr.mxu0 0.0
      %411 = vmatpush1.msra.mxu0 0.0
      %412 = vmatprep.subr.mxu0 0.0
      %413 = vmatpush1.msra.mxu0 0.0
      %414 = vmatprep.subr.mxu0 0.0
      %415 = vmatpush1.msra.mxu0 0.0
      %416 = vmatprep.subr.mxu0 0.0
      %417 = vmatpush1.msra.mxu0 0.0
      %418 = vmatprep.subr.mxu0 0.0
      %419 = vmatpush1.msra.mxu0 0.0
      %420 = vmatprep.subr.mxu0 0.0
      %421 = vmatpush1.msra.mxu0 0.0
      %422 = vmatprep.subr.mxu0 0.0
      %423 = vmatpush1.msra.mxu0 0.0
      %424 = vmatprep.subr.mxu0 0.0
      %425 = vmatpush1.msra.mxu0 0.0
      %426 = vmatprep.subr.mxu0 0.0
      %427 = vmatpush1.msra.mxu0 0.0
      %428 = vmatprep.subr.mxu0 0.0
      %429 = vmatpush1.msra.mxu0 0.0
      %430 = vmatprep.subr.mxu0 0.0
      %431 = vmatpush1.msra.mxu0 0.0
      %432 = vmatprep.subr.mxu0 0.0
      %433 = vmatpush1.msra.mxu0 0.0
      %434 = vmatprep.subr.mxu0 0.0
      %435 = vmatpush1.msra.mxu0 0.0
      %436 = vmatprep.subr.mxu0 0.0
      %437 = vmatpush1.msra.mxu0 0.0
      %438 = vmatprep.subr.mxu0 0.0
      %439 = vmatpush1.msra.mxu0 0.0
      %440 = vmatprep.subr.mxu0 0.0
      %441 = vmatpush1.msra.mxu0 0.0
      %442 = vmatprep.mubr.f32.mxu0 0.0
      %443 = vmatmul.mubr.f32.gmra.mrb[0].mxu0 %v309
      %v444 = vpop.f32.mrb[0].mxu0
      %v445 = vadd.f32 0.0, %v444
      %v446 = vpop.f32.mrb[0].mxu0
      %v447 = vadd.f32 0.0, %v446
      %448 = vmatprep.mubr.f32.mxu0 0.0
      %449 = vmatmul.mubr.f32.gmra.mrb[0].mxu0 %v310
      %v450 = vpop.f32.mrb[0].mxu0
      %v451 = vadd.f32 0.0, %v450
      %v452 = vpop.f32.mrb[0].mxu0
      %v453 = vadd.f32 0.0, %v452
      %454 = vmatprep.mubr.f32.mxu0 0.0
      %455 = vmatmul.mubr.f32.gmra.mrb[0].mxu0 %v311
      %v456 = vpop.f32.mrb[0].mxu0
      %v457 = vadd.f32 0.0, %v456
      %v458 = vpop.f32.mrb[0].mxu0
      %v459 = vadd.f32 0.0, %v458
      %460 = vmatprep.mubr.f32.mxu0 0.0
      %461 = vmatmul.mubr.f32.gmra.mrb[0].mxu0 %v312
      %v462 = vpop.f32.mrb[0].mxu0
      %v463 = vadd.f32 0.0, %v462
      %v464 = vpop.f32.mrb[0].mxu0
      %v465 = vadd.f32 0.0, %v464
      %466 = vmatprep.mubr.f32.mxu0 0.0
      %467 = vmatmul.mubr.f32.gmra.mrb[0].mxu0 %v313
      %v468 = vpop.f32.mrb[0].mxu0
      %v469 = vadd.f32 0.0, %v468
      %v470 = vpop.f32.mrb[0].mxu0
      %v471 = vadd.f32 0.0, %v470
      %472 = vdwg.mxu0
      %473 = vmatprep.subr.mxu0 %v317
      %474 = vmatpush1.msra.mxu0 %v316
      %475 = vmatprep.subr.mxu0 %v321
      %476 = vmatpush1.msra.mxu0 %v320
      %477 = vmatprep.subr.mxu0 %v325
      %478 = vmatpush1.msra.mxu0 %v324
      %479 = vmatprep.subr.mxu0 %v329
      %480 = vmatpush1.msra.mxu0 %v328
      %481 = vmatprep.subr.mxu0 %v333
      %482 = vmatpush1.msra.mxu0 %v332
      %483 = vmatprep.subr.mxu0 %v337
      %484 = vmatpush1.msra.mxu0 %v336
      %485 = vmatprep.subr.mxu0 %v341
      %486 = vmatpush1.msra.mxu0 %v340
      %487 = vmatprep.subr.mxu0 %v345
      %488 = vmatpush1.msra.mxu0 %v344
      %489 = vmatprep.subr.mxu0 %v349
      %490 = vmatpush1.msra.mxu0 %v348
      %491 = vmatprep.subr.mxu0 %v353
      %492 = vmatpush1.msra.mxu0 %v352
      %493 = vmatprep.subr.mxu0 %v357
      %494 = vmatpush1.msra.mxu0 %v356
      %495 = vmatprep.subr.mxu0 %v361
      %496 = vmatpush1.msra.mxu0 %v360
      %497 = vmatprep.subr.mxu0 %v365
      %498 = vmatpush1.msra.mxu0 %v364
      %499 = vmatprep.subr.mxu0 %v369
      %500 = vmatpush1.msra.mxu0 %v368
      %501 = vmatprep.subr.mxu0 %v373
      %502 = vmatpush1.msra.mxu0 %v372
      %503 = vmatprep.subr.mxu0 %v377
      %504 = vmatpush1.msra.mxu0 %v376
      %505 = vmatprep.subr.mxu0 0.0
      %506 = vmatpush1.msra.mxu0 0.0
      %507 = vmatprep.subr.mxu0 0.0
      %508 = vmatpush1.msra.mxu0 0.0
      %509 = vmatprep.subr.mxu0 0.0
      %510 = vmatpush1.msra.mxu0 0.0
      %511 = vmatprep.subr.mxu0 0.0
      %512 = vmatpush1.msra.mxu0 0.0
      %513 = vmatprep.subr.mxu0 0.0
      %514 = vmatpush1.msra.mxu0 0.0
      %515 = vmatprep.subr.mxu0 0.0
      %516 = vmatpush1.msra.mxu0 0.0
      %517 = vmatprep.subr.mxu0 0.0
      %518 = vmatpush1.msra.mxu0 0.0
      %519 = vmatprep.subr.mxu0 0.0
      %520 = vmatpush1.msra.mxu0 0.0
      %521 = vmatprep.subr.mxu0 0.0
      %522 = vmatpush1.msra.mxu0 0.0
      %523 = vmatprep.subr.mxu0 0.0
      %524 = vmatpush1.msra.mxu0 0.0
      %525 = vmatprep.subr.mxu0 0.0
      %526 = vmatpush1.msra.mxu0 0.0
      %527 = vmatprep.subr.mxu0 0.0
      %528 = vmatpush1.msra.mxu0 0.0
      %529 = vmatprep.subr.mxu0 0.0
      %530 = vmatpush1.msra.mxu0 0.0
      %531 = vmatprep.subr.mxu0 0.0
      %532 = vmatpush1.msra.mxu0 0.0
      %533 = vmatprep.subr.mxu0 0.0
      %534 = vmatpush1.msra.mxu0 0.0
      %535 = vmatprep.subr.mxu0 0.0
      %536 = vmatpush1.msra.mxu0 0.0
      %537 = vmatprep.mubr.f32.mxu0 0.0
      %538 = vmatmul.mubr.f32.gmra.mrb[0].mxu0 %v309
      %v539 = vpop.f32.mrb[0].mxu0
      %v540 = vadd.f32 0.0, %v539
      %v541 = vpop.f32.mrb[0].mxu0
      %v542 = vadd.f32 0.0, %v541
      %543 = vmatprep.mubr.f32.mxu0 0.0
      %544 = vmatmul.mubr.f32.gmra.mrb[0].mxu0 %v310
      %v545 = vpop.f32.mrb[0].mxu0
      %v546 = vadd.f32 0.0, %v545
      %v547 = vpop.f32.mrb[0].mxu0
      %v548 = vadd.f32 0.0, %v547
      %549 = vmatprep.mubr.f32.mxu0 0.0
      %550 = vmatmul.mubr.f32.gmra.mrb[0].mxu0 %v311
      %v551 = vpop.f32.mrb[0].mxu0
      %v552 = vadd.f32 0.0, %v551
      %v553 = vpop.f32.mrb[0].mxu0
      %v554 = vadd.f32 0.0, %v553
      %555 = vmatprep.mubr.f32.mxu0 0.0
      %556 = vmatmul.mubr.f32.gmra.mrb[0].mxu0 %v312
      %v557 = vpop.f32.mrb[0].mxu0
      %v558 = vadd.f32 0.0, %v557
      %v559 = vpop.f32.mrb[0].mxu0
      %v560 = vadd.f32 0.0, %v559
      %561 = vmatprep.mubr.f32.mxu0 0.0
      %562 = vmatmul.mubr.f32.gmra.mrb[0].mxu0 %v313
      %v563 = vpop.f32.mrb[0].mxu0
      %v564 = vadd.f32 0.0, %v563
      %v565 = vpop.f32.mrb[0].mxu0
      %v566 = vadd.f32 0.0, %v565
      %567 = vdwg.mxu0
      %568 = vmatprep.subr.mxu0 %v245
      %569 = vmatpush1.msra.mxu0 %v244
      %570 = vmatprep.subr.mxu0 %v249
      %571 = vmatpush1.msra.mxu0 %v248
      %572 = vmatprep.subr.mxu0 %v253
      %573 = vmatpush1.msra.mxu0 %v252
      %574 = vmatprep.subr.mxu0 %v257
      %575 = vmatpush1.msra.mxu0 %v256
      %576 = vmatprep.subr.mxu0 %v261
      %577 = vmatpush1.msra.mxu0 %v260
      %578 = vmatprep.subr.mxu0 %v265
      %579 = vmatpush1.msra.mxu0 %v264
      %580 = vmatprep.subr.mxu0 %v269
      %581 = vmatpush1.msra.mxu0 %v268
      %582 = vmatprep.subr.mxu0 %v273
      %583 = vmatpush1.msra.mxu0 %v272
      %584 = vmatprep.subr.mxu0 %v277
      %585 = vmatpush1.msra.mxu0 %v276
      %586 = vmatprep.subr.mxu0 %v281
      %587 = vmatpush1.msra.mxu0 %v280
      %588 = vmatprep.subr.mxu0 %v285
      %589 = vmatpush1.msra.mxu0 %v284
      %590 = vmatprep.subr.mxu0 %v289
      %591 = vmatpush1.msra.mxu0 %v288
      %592 = vmatprep.subr.mxu0 %v293
      %593 = vmatpush1.msra.mxu0 %v292
      %594 = vmatprep.subr.mxu0 %v297
      %595 = vmatpush1.msra.mxu0 %v296
      %596 = vmatprep.subr.mxu0 %v301
      %597 = vmatpush1.msra.mxu0 %v300
      %598 = vmatprep.subr.mxu0 %v305
      %599 = vmatpush1.msra.mxu0 %v304
      %600 = vmatprep.subr.mxu0 0.0
      %601 = vmatpush1.msra.mxu0 0.0
      %602 = vmatprep.subr.mxu0 0.0
      %603 = vmatpush1.msra.mxu0 0.0
      %604 = vmatprep.subr.mxu0 0.0
      %605 = vmatpush1.msra.mxu0 0.0
      %606 = vmatprep.subr.mxu0 0.0
      %607 = vmatpush1.msra.mxu0 0.0
      %608 = vmatprep.subr.mxu0 0.0
      %609 = vmatpush1.msra.mxu0 0.0
      %610 = vmatprep.subr.mxu0 0.0
      %611 = vmatpush1.msra.mxu0 0.0
      %612 = vmatprep.subr.mxu0 0.0
      %613 = vmatpush1.msra.mxu0 0.0
      %614 = vmatprep.subr.mxu0 0.0
      %615 = vmatpush1.msra.mxu0 0.0
      %616 = vmatprep.subr.mxu0 0.0
      %617 = vmatpush1.msra.mxu0 0.0
      %618 = vmatprep.subr.mxu0 0.0
      %619 = vmatpush1.msra.mxu0 0.0
      %620 = vmatprep.subr.mxu0 0.0
      %621 = vmatpush1.msra.mxu0 0.0
      %622 = vmatprep.subr.mxu0 0.0
      %623 = vmatpush1.msra.mxu0 0.0
      %624 = vmatprep.subr.mxu0 0.0
      %625 = vmatpush1.msra.mxu0 0.0
      %626 = vmatprep.subr.mxu0 0.0
      %627 = vmatpush1.msra.mxu0 0.0
      %628 = vmatprep.subr.mxu0 0.0
      %629 = vmatpush1.msra.mxu0 0.0
      %630 = vmatprep.subr.mxu0 0.0
      %631 = vmatpush1.msra.mxu0 0.0
      %632 = vmatprep.mubr.f32.mxu0 0.0
      %633 = vmatmul.mubr.f32.gmra.mrb[0].mxu0 %v239
      %v634 = vpop.f32.mrb[0].mxu0
      %v635 = vadd.f32 %v445, %v634
      %v636 = vpop.f32.mrb[0].mxu0
      %v637 = vadd.f32 %v447, %v636
      %638 = vmatprep.mubr.f32.mxu0 0.0
      %639 = vmatmul.mubr.f32.gmra.mrb[0].mxu0 %v240
      %v640 = vpop.f32.mrb[0].mxu0
      %v641 = vadd.f32 %v451, %v640
      %v642 = vpop.f32.mrb[0].mxu0
      %v643 = vadd.f32 %v453, %v642
      %644 = vmatprep.mubr.f32.mxu0 0.0
      %645 = vmatmul.mubr.f32.gmra.mrb[0].mxu0 %v241
      %v646 = vpop.f32.mrb[0].mxu0
      %v647 = vadd.f32 %v457, %v646
      %v648 = vpop.f32.mrb[0].mxu0
      %v649 = vadd.f32 %v459, %v648
      %650 = vmatprep.mubr.f32.mxu0 0.0
      %651 = vmatmul.mubr.f32.gmra.mrb[0].mxu0 %v242
      %v652 = vpop.f32.mrb[0].mxu0
      %v653 = vadd.f32 %v463, %v652
      %v654 = vpop.f32.mrb[0].mxu0
      %v655 = vadd.f32 %v465, %v654
      %656 = vmatprep.mubr.f32.mxu0 0.0
      %657 = vmatmul.mubr.f32.gmra.mrb[0].mxu0 %v243
      %v658 = vpop.f32.mrb[0].mxu0
      %v659 = vadd.f32 %v469, %v658
      %v660 = vpop.f32.mrb[0].mxu0
      %v661 = vadd.f32 %v471, %v660
      %662 = vdwg.mxu0
      %663 = vmatprep.subr.mxu0 %v247
      %664 = vmatpush1.msra.mxu0 %v246
      %665 = vmatprep.subr.mxu0 %v251
      %666 = vmatpush1.msra.mxu0 %v250
      %667 = vmatprep.subr.mxu0 %v255
      %668 = vmatpush1.msra.mxu0 %v254
      %669 = vmatprep.subr.mxu0 %v259
      %670 = vmatpush1.msra.mxu0 %v258
      %671 = vmatprep.subr.mxu0 %v263
      %672 = vmatpush1.msra.mxu0 %v262
      %673 = vmatprep.subr.mxu0 %v267
      %674 = vmatpush1.msra.mxu0 %v266
      %675 = vmatprep.subr.mxu0 %v271
      %676 = vmatpush1.msra.mxu0 %v270
      %677 = vmatprep.subr.mxu0 %v275
      %678 = vmatpush1.msra.mxu0 %v274
      %679 = vmatprep.subr.mxu0 %v279
      %680 = vmatpush1.msra.mxu0 %v278
      %681 = vmatprep.subr.mxu0 %v283
      %682 = vmatpush1.msra.mxu0 %v282
      %683 = vmatprep.subr.mxu0 %v287
      %684 = vmatpush1.msra.mxu0 %v286
      %685 = vmatprep.subr.mxu0 %v291
      %686 = vmatpush1.msra.mxu0 %v290
      %687 = vmatprep.subr.mxu0 %v295
      %688 = vmatpush1.msra.mxu0 %v294
      %689 = vmatprep.subr.mxu0 %v299
      %690 = vmatpush1.msra.mxu0 %v298
      %691 = vmatprep.subr.mxu0 %v303
      %692 = vmatpush1.msra.mxu0 %v302
      %693 = vmatprep.subr.mxu0 %v307
      %694 = vmatpush1.msra.mxu0 %v306
      %695 = vmatprep.subr.mxu0 0.0
      %696 = vmatpush1.msra.mxu0 0.0
      %697 = vmatprep.subr.mxu0 0.0
      %698 = vmatpush1.msra.mxu0 0.0
      %699 = vmatprep.subr.mxu0 0.0
      %700 = vmatpush1.msra.mxu0 0.0
      %701 = vmatprep.subr.mxu0 0.0
      %702 = vmatpush1.msra.mxu0 0.0
      %703 = vmatprep.subr.mxu0 0.0
      %704 = vmatpush1.msra.mxu0 0.0
      %705 = vmatprep.subr.mxu0 0.0
      %706 = vmatpush1.msra.mxu0 0.0
      %707 = vmatprep.subr.mxu0 0.0
      %708 = vmatpush1.msra.mxu0 0.0
      %709 = vmatprep.subr.mxu0 0.0
      %710 = vmatpush1.msra.mxu0 0.0
      %711 = vmatprep.subr.mxu0 0.0
      %712 = vmatpush1.msra.mxu0 0.0
      %713 = vmatprep.subr.mxu0 0.0
      %714 = vmatpush1.msra.mxu0 0.0
      %715 = vmatprep.subr.mxu0 0.0
      %716 = vmatpush1.msra.mxu0 0.0
      %717 = vmatprep.subr.mxu0 0.0
      %718 = vmatpush1.msra.mxu0 0.0
      %719 = vmatprep.subr.mxu0 0.0
      %720 = vmatpush1.msra.mxu0 0.0
      %721 = vmatprep.subr.mxu0 0.0
      %722 = vmatpush1.msra.mxu0 0.0
      %723 = vmatprep.subr.mxu0 0.0
      %724 = vmatpush1.msra.mxu0 0.0
      %725 = vmatprep.subr.mxu0 0.0
      %726 = vmatpush1.msra.mxu0 0.0
      %727 = vmatprep.mubr.f32.mxu0 0.0
      %728 = vmatmul.mubr.f32.gmra.mrb[0].mxu0 %v239
      %v729 = vpop.f32.mrb[0].mxu0
      %v730 = vadd.f32 %v540, %v729
      %v731 = vpop.f32.mrb[0].mxu0
      %v732 = vadd.f32 %v542, %v731
      %733 = vmatprep.mubr.f32.mxu0 0.0
      %734 = vmatmul.mubr.f32.gmra.mrb[0].mxu0 %v240
      %v735 = vpop.f32.mrb[0].mxu0
      %v736 = vadd.f32 %v546, %v735
      %v737 = vpop.f32.mrb[0].mxu0
      %v738 = vadd.f32 %v548, %v737
      %739 = vmatprep.mubr.f32.mxu0 0.0
      %740 = vmatmul.mubr.f32.gmra.mrb[0].mxu0 %v241
      %v741 = vpop.f32.mrb[0].mxu0
      %v742 = vadd.f32 %v552, %v741
      %v743 = vpop.f32.mrb[0].mxu0
      %v744 = vadd.f32 %v554, %v743
      %745 = vmatprep.mubr.f32.mxu0 0.0
      %746 = vmatmul.mubr.f32.gmra.mrb[0].mxu0 %v242
      %v747 = vpop.f32.mrb[0].mxu0
      %v748 = vadd.f32 %v558, %v747
      %v749 = vpop.f32.mrb[0].mxu0
      %v750 = vadd.f32 %v560, %v749
      %751 = vmatprep.mubr.f32.mxu0 0.0
      %752 = vmatmul.mubr.f32.gmra.mrb[0].mxu0 %v243
      %v753 = vpop.f32.mrb[0].mxu0
      %v754 = vadd.f32 %v564, %v753
      %v755 = vpop.f32.mrb[0].mxu0
      %v756 = vadd.f32 %v566, %v755
      %757 = vdwg.mxu0
      %v758 = vmul.f32 %v635, %v635
      %v759 = vmul.f32 %v637, %v637
      %v760 = vmul.f32 %v641, %v641
      %v761 = vmul.f32 %v643, %v643
      %v762 = vmul.f32 %v647, %v647
      %v763 = vmul.f32 %v649, %v649
      %v764 = vmul.f32 %v653, %v653
      %v765 = vmul.f32 %v655, %v655
      %v766 = vmul.f32 %v659, %v659
      %v767 = vmul.f32 %v661, %v661
      %v768 = vmul.f32 %v730, %v730
      %v769 = vmul.f32 %v732, %v732
      %v770 = vmul.f32 %v736, %v736
      %v771 = vmul.f32 %v738, %v738
      %v772 = vmul.f32 %v742, %v742
      %v773 = vmul.f32 %v744, %v744
      %v774 = vmul.f32 %v748, %v748
      %v775 = vmul.f32 %v750, %v750
      %v776 = vmul.f32 %v754, %v754
      %v777 = vmul.f32 %v756, %v756
      %v778 = vadd.f32 %v758, %v768
      %v779 = vadd.f32 %v759, %v769
      %v780 = vadd.f32 %v760, %v770
      %v781 = vadd.f32 %v761, %v771
      %v782 = vadd.f32 %v762, %v772
      %v783 = vadd.f32 %v763, %v773
      %v784 = vadd.f32 %v764, %v774
      %v785 = vadd.f32 %v765, %v775
      %v786 = vadd.f32 %v766, %v776
      %v787 = vadd.f32 %v767, %v777
      %v788 = vrsqrt.pop %v778
      %v789 = vmul.f32 %v778, %v788
      %vm790 = vcmp.eq.f32.partialorder %v778, inf
      %v791 = vsel %vm790, %v778, %v789
      %vm792 = vcmp.eq.f32.partialorder %v778, 0.0
      %v793 = vand.u32 %v778, 2147483648
      %v794 = vsel %vm792, %v793, %v791
      %v795 = vrsqrt.pop %v779
      %v796 = vmul.f32 %v779, %v795
      %vm797 = vcmp.eq.f32.partialorder %v779, inf
      %v798 = vsel %vm797, %v779, %v796
      %vm799 = vcmp.eq.f32.partialorder %v779, 0.0
      %v800 = vand.u32 %v779, 2147483648
      %v801 = vsel %vm799, %v800, %v798
      %v802 = vrsqrt.pop %v780
      %v803 = vmul.f32 %v780, %v802
      %vm804 = vcmp.eq.f32.partialorder %v780, inf
      %v805 = vsel %vm804, %v780, %v803
      %vm806 = vcmp.eq.f32.partialorder %v780, 0.0
      %v807 = vand.u32 %v780, 2147483648
      %v808 = vsel %vm806, %v807, %v805
      %v809 = vrsqrt.pop %v781
      %v810 = vmul.f32 %v781, %v809
      %vm811 = vcmp.eq.f32.partialorder %v781, inf
      %v812 = vsel %vm811, %v781, %v810
      %vm813 = vcmp.eq.f32.partialorder %v781, 0.0
      %v814 = vand.u32 %v781, 2147483648
      %v815 = vsel %vm813, %v814, %v812
      %v816 = vrsqrt.pop %v782
      %v817 = vmul.f32 %v782, %v816
      %vm818 = vcmp.eq.f32.partialorder %v782, inf
      %v819 = vsel %vm818, %v782, %v817
      %vm820 = vcmp.eq.f32.partialorder %v782, 0.0
      %v821 = vand.u32 %v782, 2147483648
      %v822 = vsel %vm820, %v821, %v819
      %v823 = vrsqrt.pop %v783
      %v824 = vmul.f32 %v783, %v823
      %vm825 = vcmp.eq.f32.partialorder %v783, inf
      %v826 = vsel %vm825, %v783, %v824
      %vm827 = vcmp.eq.f32.partialorder %v783, 0.0
      %v828 = vand.u32 %v783, 2147483648
      %v829 = vsel %vm827, %v828, %v826
      %v830 = vrsqrt.pop %v784
      %v831 = vmul.f32 %v784, %v830
      %vm832 = vcmp.eq.f32.partialorder %v784, inf
      %v833 = vsel %vm832, %v784, %v831
      %vm834 = vcmp.eq.f32.partialorder %v784, 0.0
      %v835 = vand.u32 %v784, 2147483648
      %v836 = vsel %vm834, %v835, %v833
      %v837 = vrsqrt.pop %v785
      %v838 = vmul.f32 %v785, %v837
      %vm839 = vcmp.eq.f32.partialorder %v785, inf
      %v840 = vsel %vm839, %v785, %v838
      %vm841 = vcmp.eq.f32.partialorder %v785, 0.0
      %v842 = vand.u32 %v785, 2147483648
      %v843 = vsel %vm841, %v842, %v840
      %v844 = vrsqrt.pop %v786
      %v845 = vmul.f32 %v786, %v844
      %vm846 = vcmp.eq.f32.partialorder %v786, inf
      %v847 = vsel %vm846, %v786, %v845
      %vm848 = vcmp.eq.f32.partialorder %v786, 0.0
      %v849 = vand.u32 %v786, 2147483648
      %v850 = vsel %vm848, %v849, %v847
      %v851 = vrsqrt.pop %v787
      %v852 = vmul.f32 %v787, %v851
      %vm853 = vcmp.eq.f32.partialorder %v787, inf
      %v854 = vsel %vm853, %v787, %v852
      %vm855 = vcmp.eq.f32.partialorder %v787, 0.0
      %v856 = vand.u32 %v787, 2147483648
      %v857 = vsel %vm855, %v856, %v854
      %v858 = vld [vmem:[%s2] sm:$0xff]
      %v859 = vld [vmem:[%s2 + $0x8] sm:$0xff]
      %v860 = vld [vmem:[%s2 + $0x10] sm:$0xff]
      %v861 = vld [vmem:[%s2 + $0x18] sm:$0xff]
      %v862 = vld [vmem:[%s2 + $0x20] sm:$0xff]
      %v863 = vld [vmem:[%s2 + $0x28] sm:$0xff]
      %v864 = vld [vmem:[%s2 + $0x30] sm:$0xff]
      %v865 = vld [vmem:[%s2 + $0x38] sm:$0xff]
      %v866 = vld [vmem:[%s2 + $0x40] sm:$0xff]
      %v867 = vld [vmem:[%s2 + $0x48] sm:$0xff]
      %v868 = vld [vmem:[%s2 + $0x50] sm:$0xff]
      %v869 = vld [vmem:[%s2 + $0x58] sm:$0xff]
      %v870 = vld [vmem:[%s2 + $0x60] sm:$0xff]
      %v871 = vld [vmem:[%s2 + $0x68] sm:$0xff]
      %v872 = vld [vmem:[%s2 + $0x70] sm:$0xff]
      %v873 = vld [vmem:[%s2 + $0x78] sm:$0xff]
      %v874 = vld [vmem:[%s2 + $0x80] sm:$0xff]
      %v875 = vld [vmem:[%s2 + $0x88] sm:$0xff]
      %v876 = vld [vmem:[%s2 + $0x90] sm:$0xff]
      %v877 = vld [vmem:[%s2 + $0x98] sm:$0xff]
      %v878 = vld [vmem:[%s2 + $0xa0] sm:$0xff]
      %v879 = vld [vmem:[%s2 + $0xa8] sm:$0xff]
      %v880 = vld [vmem:[%s2 + $0xb0] sm:$0xff]
      %v881 = vld [vmem:[%s2 + $0xb8] sm:$0xff]
      %v882 = vld [vmem:[%s2 + $0xc0] sm:$0xff]
      %v883 = vld [vmem:[%s2 + $0xc8] sm:$0xff]
      %v884 = vld [vmem:[%s2 + $0xd0] sm:$0xff]
      %v885 = vld [vmem:[%s2 + $0xd8] sm:$0xff]
      %v886 = vld [vmem:[%s2 + $0xe0] sm:$0xff]
      %v887 = vld [vmem:[%s2 + $0xe8] sm:$0xff]
      %v888 = vld [vmem:[%s2 + $0xf0] sm:$0xff]
      %v889 = vld [vmem:[%s2 + $0xf8] sm:$0xff]
      %890 = vmatprep.subr.mxu0 0.0
      %891 = vmatpush1.msra.mxu0 %v858
      %892 = vmatprep.subr.mxu0 0.0
      %893 = vmatpush1.msra.mxu0 %v859
      %894 = vmatprep.subr.mxu0 0.0
      %895 = vmatpush1.msra.mxu0 %v860
      %896 = vmatprep.subr.mxu0 0.0
      %897 = vmatpush1.msra.mxu0 %v861
      %898 = vmatprep.subr.mxu0 0.0
      %899 = vmatpush1.msra.mxu0 %v862
      %900 = vmatprep.subr.mxu0 0.0
      %901 = vmatpush1.msra.mxu0 %v863
      %902 = vmatprep.subr.mxu0 0.0
      %903 = vmatpush1.msra.mxu0 %v864
      %904 = vmatprep.subr.mxu0 0.0
      %905 = vmatpush1.msra.mxu0 %v865
      %906 = vmatprep.subr.mxu0 0.0
      %907 = vmatpush1.msra.mxu0 %v866
      %908 = vmatprep.subr.mxu0 0.0
      %909 = vmatpush1.msra.mxu0 %v867
      %910 = vmatprep.subr.mxu0 0.0
      %911 = vmatpush1.msra.mxu0 %v868
      %912 = vmatprep.subr.mxu0 0.0
      %913 = vmatpush1.msra.mxu0 %v869
      %914 = vmatprep.subr.mxu0 0.0
      %915 = vmatpush1.msra.mxu0 %v870
      %916 = vmatprep.subr.mxu0 0.0
      %917 = vmatpush1.msra.mxu0 %v871
      %918 = vmatprep.subr.mxu0 0.0
      %919 = vmatpush1.msra.mxu0 %v872
      %920 = vmatprep.subr.mxu0 0.0
      %921 = vmatpush1.msra.mxu0 %v873
      %922 = vmatprep.subr.mxu0 0.0
      %923 = vmatpush1.msra.mxu0 %v874
      %924 = vmatprep.subr.mxu0 0.0
      %925 = vmatpush1.msra.mxu0 %v875
      %926 = vmatprep.subr.mxu0 0.0
      %927 = vmatpush1.msra.mxu0 %v876
      %928 = vmatprep.subr.mxu0 0.0
      %929 = vmatpush1.msra.mxu0 %v877
      %930 = vmatprep.subr.mxu0 0.0
      %931 = vmatpush1.msra.mxu0 %v878
      %932 = vmatprep.subr.mxu0 0.0
      %933 = vmatpush1.msra.mxu0 %v879
      %934 = vmatprep.subr.mxu0 0.0
      %935 = vmatpush1.msra.mxu0 %v880
      %936 = vmatprep.subr.mxu0 0.0
      %937 = vmatpush1.msra.mxu0 %v881
      %938 = vmatprep.subr.mxu0 0.0
      %939 = vmatpush1.msra.mxu0 %v882
      %940 = vmatprep.subr.mxu0 0.0
      %941 = vmatpush1.msra.mxu0 %v883
      %942 = vmatprep.subr.mxu0 0.0
      %943 = vmatpush1.msra.mxu0 %v884
      %944 = vmatprep.subr.mxu0 0.0
      %945 = vmatpush1.msra.mxu0 %v885
      %946 = vmatprep.subr.mxu0 0.0
      %947 = vmatpush1.msra.mxu0 %v886
      %948 = vmatprep.subr.mxu0 0.0
      %949 = vmatpush1.msra.mxu0 %v887
      %950 = vmatprep.subr.mxu0 0.0
      %951 = vmatpush1.msra.mxu0 %v888
      %952 = vmatprep.subr.mxu0 0.0
      %953 = vmatpush1.msra.mxu0 %v889
      %954 = vmatprep.mubr.f32.mxu0 %v801
      %955 = vmatmul.mubr.f32.gmra.mrb[0].mxu0 %v794
      %v956 = vpop.f32.mrb[0].mxu0
      %v957 = vadd.f32 1e-05, %v956
      %v958 = vpop.f32.mrb[0].mxu0
      %959 = vmatprep.mubr.f32.mxu0 %v815
      %960 = vmatmul.mubr.f32.gmra.mrb[0].mxu0 %v808
      %v961 = vpop.f32.mrb[0].mxu0
      %v962 = vadd.f32 1e-05, %v961
      %v963 = vpop.f32.mrb[0].mxu0
      %964 = vmatprep.mubr.f32.mxu0 %v829
      %965 = vmatmul.mubr.f32.gmra.mrb[0].mxu0 %v822
      %v966 = vpop.f32.mrb[0].mxu0
      %v967 = vadd.f32 1e-05, %v966
      %v968 = vpop.f32.mrb[0].mxu0
      %969 = vmatprep.mubr.f32.mxu0 %v843
      %970 = vmatmul.mubr.f32.gmra.mrb[0].mxu0 %v836
      %v971 = vpop.f32.mrb[0].mxu0
      %v972 = vadd.f32 1e-05, %v971
      %v973 = vpop.f32.mrb[0].mxu0
      %974 = vmatprep.mubr.f32.mxu0 %v857
      %975 = vmatmul.mubr.f32.gmra.mrb[0].mxu0 %v850
      %v976 = vpop.f32.mrb[0].mxu0
      %v977 = vadd.f32 1e-05, %v976
      %v978 = vpop.f32.mrb[0].mxu0
      %979 = vdwg.mxu0
      %v980 = vlog2.pop %v957
      %v981 = vmul.f32 %v980, 0.6931472
      %v982 = vlog2.pop %v962
      %v983 = vmul.f32 %v982, 0.6931472
      %v984 = vlog2.pop %v967
      %v985 = vmul.f32 %v984, 0.6931472
      %v986 = vlog2.pop %v972
      %v987 = vmul.f32 %v986, 0.6931472
      %v988 = vlog2.pop %v977
      %v989 = vmul.f32 %v988, 0.6931472
      %v990 = vlaneseq
      %v991 = vshrl.u32 %v990, 7
      %v992 = vsub.s32 0, %v991
      %v993 = vrot.slane %v237, %v992
      %v994 = vmul.f32 %v981, %v993
      %v995 = vmul.f32 %v983, %v993
      %v996 = vmul.f32 %v985, %v993
      %v997 = vmul.f32 %v987, %v993
      %v998 = vmul.f32 %v989, %v993
      %v999 = vlaneseq
      %v1000 = vshrl.u32 %v999, 7
      %v1001 = vsub.s32 0, %v1000
      %v1002 = vrot.slane %v238, %v1001
      %v1003 = vadd.f32 %v994, %v1002
      %v1004 = vadd.f32 %v995, %v1002
      %v1005 = vadd.f32 %v996, %v1002
      %v1006 = vadd.f32 %v997, %v1002
      %v1007 = vadd.f32 %v998, %v1002
      %v1008 = vmax.f32 %v1003, -1.0
      %v1009 = vmax.f32 %v1004, -1.0
      %v1010 = vmax.f32 %v1005, -1.0
      %v1011 = vmax.f32 %v1006, -1.0
      %v1012 = vmax.f32 %v1007, -1.0
      %v1013 = vmin.f32 %v1008, 1.0
      %v1014 = vmin.f32 %v1009, 1.0
      %v1015 = vmin.f32 %v1010, 1.0
      %v1016 = vmin.f32 %v1011, 1.0
      %v1017 = vmin.f32 %v1012, 1.0
      %1018 = vst [vmem:[%s235] sm:$0xff] %v1013
      %1019 = vst [vmem:[%s235 + $0x8] sm:$0xff] %v1014
      %1020 = vst [vmem:[%s235 + $0x10] sm:$0xff] %v1015
      %1021 = vst [vmem:[%s235 + $0x18] sm:$0xff] %v1016
      %1022 = vst [vmem:[%s235 + $0x20] sm:$0xff] %v1017
      %s1023 = smul.u32 5, %s20
      %p1024 = scmp.lt.s32.totalorder %s19, 3
      %s1025 = scalar_select %p1024, %s19, 3
      %p1026 = scmp.lt.s32.totalorder %s1023, 4
      %s1027 = scalar_select %p1026, %s1023, 4
      %s1028 = smul.addr %s1025, 5
      %s1029 = sadd.s32 %s1027, %s1028
      %s1030 = smul.addr %s1029, 8
      %s1031 = scalar_lea.vmem %s4, %s1030
      // Predicated region
      $region37: #{transform.1} parent=35 // pred_check
        %p1032 = pneg %p138
      $region38: #{transform.1} parent=35 // pred_check_branch
        %1034 = sbr.rel (%p1032) target = $region40
      $region39: #{transform.1} parent=35 // pred_region
        %s1035 = smul.u32 5, %s20
      $region40: #{transform.1} parent=35 // pred_fallthru
        _
    $region36: #{transform.1} parent=5 // pred_fallthru
      _
    %p1036 = scmp.le.s32.totalorder 2, %s10
    // Predicated region
    $region41: #{transform.1} parent=5 // pred_check
      %p1037 = pneg %p1036
    $region42: #{transform.1} parent=5 // pred_check_branch
      %1039 = sbr.rel (%p1037) target = $region44
    $region43: #{transform.1} parent=5 // pred_region
      %s1040 = ssub.s32 %s10, 2
      // Predicated region
      $region45: #{transform.1} parent=43 // pred_check
        %p1041 = pneg %p144
      $region46: #{transform.1} parent=43 // pred_check_branch
        %1043 = sbr.rel (%p1041) target = $region48
      $region47: #{transform.1} parent=43 // pred_region
        %s1044 = smul.u32 5, %s22
        %p1045 = scmp.lt.s32.totalorder %s21, 3
        %s1046 = scalar_select %p1045, %s21, 3
        %p1047 = scmp.lt.s32.totalorder %s1044, 4
        %s1048 = scalar_select %p1047, %s1044, 4
        %s1049 = smul.addr %s1046, 5
        %s1050 = sadd.s32 %s1048, %s1049
        %s1051 = smul.addr %s1050, 8
        %s1052 = scalar_lea.vmem %s4, %s1051
      $region48: #{transform.1} parent=43 // pred_fallthru
        _
    $region44: #{transform.1} parent=5 // pred_fallthru
      _
  $region6: #{transform.1} parent=0 // loop_footer
    %s14 = sadd.s32 1, %s10
  $region7: #{transform.1} parent=0 // loop_footer_branch
    %9 = sbr.rel target = $region3
  $region8: #{transform.1} parent=0 // loop_exit
    _

</llo_original>
